<compile_context>
chip_gen: v7x
topology: tpu7x:2x2x1
jax: 0.10.0
libtpu: 0.0.40
codegen_flags: <defaults>
</compile_context>

<pallas_src>
import jax
import jax.numpy as jnp
import numpy as np
from jax.experimental import pallas as pl
from jax.experimental.pallas import tpu as pltpu

# ---------------- sizes (small, consistent with the module) ----------------
B = 8          # n_samples
A = 16         # n_atoms
H = 64         # hidden_channels
H2 = H // 2    # GatedEquivariantBlock intermediate width
C = 64         # intermediate_channels
OUT = 16       # output_channels
OUT_PAD = 128  # lane-padded output width (wrapper slices back to OUT)
NUM_MLP_LAYERS = 3

# ---------------- packed-parameter slab layout (row offsets) ----------------
# Every weight is zero-padded to 128 lanes and stacked along rows; all weight
# row offsets are multiples of 8 so slab slices are tile-aligned.
R_VA   = 0                    # (H, H+H2)   block1 vec1_proj | vec2_proj fused
R_U1A  = R_VA + H             # (2H, H)     block1 update_net linear 1 (K=128)
R_U2A  = R_U1A + 2 * H        # (H, H)      block1 update_net linear 2 (scalar|gate)
R_V1B  = R_U2A + H            # (H2, H2)    block2 vec1_proj
R_U1B  = R_V1B + H2           # (2*H2, H2)  block2 update_net linear 1 (K=64)
R_U2B  = R_U1B + 2 * H2       # (H2, C)     block2 update_net linear 2, scalar half
R_M1   = R_U2B + H2           # (C, C)      MLP layer 1
R_M2   = R_M1 + C             # (C, C)      MLP layer 2
R_M3   = R_M2 + C             # (C, OUT_PAD)MLP layer 3 (lane-padded)
R_BIAS = R_M3 + C             # 7 bias rows: u1a, u2a, u1b, u2b_s, m1, m2, m3
SLAB_ROWS = R_BIAS + 8        # pad row count to a multiple of 8 -> 584


def _silu(x):
    return x * jax.nn.sigmoid(x)


# ------------------------------ Pallas kernel ------------------------------
def lobe_kernel(x_ref, v_ref, w_ref, out_ref):
    """x_ref: (B,H) scalar feats (atoms summed); v_ref: (3B,H) vector feats,
    component-major; w_ref: (SLAB_ROWS,128) packed params; out_ref: (B,OUT_PAD)."""
    f32 = jnp.float32
    x = x_ref[...]                                   # (B, H)
    v = v_ref[...]                                   # (3B, H)
    b = B

    def W(r0, rows, cols):                            # static slab slice -> weight
        return w_ref[r0:r0 + rows, 0:cols]

    def bias(i, cols):                                # single bias row -> (1, cols)
        return w_ref[R_BIAS + i:R_BIAS + i + 1, 0:cols]

    # ----- GatedEquivariantBlock 1 (H -> H//2, scalar_activation=True) -----
    # fused vec1_proj | vec2_proj: one (3B,H) x (H, H+H2) matmul, 96-wide result
    vw = jnp.dot(v, W(R_VA, H, H + H2), preferred_element_type=f32)    # (3B, 96)
    vec1 = vw[:, :H].reshape(3, b, H)                                  # (3, B, H)
    vec1n = jnp.sqrt(jnp.sum(vec1 * vec1, axis=0))                     # (B, H)

    # update_net linear 1: lane-concat [x | norm] -> single K=128 matmul
    h = _silu(jnp.dot(jnp.concatenate([x, vec1n], axis=1),
                      W(R_U1A, 2 * H, H), preferred_element_type=f32)
              + bias(0, H))                                            # (B, H)

    # update_net linear 2: fused scalar|gate columns, lane-slice the result
    o = jnp.dot(h, W(R_U2A, H, H), preferred_element_type=f32) + bias(1, H)
    x1 = _silu(o[:, :H2])                                              # (B, H2)
    gate = o[:, H2:H]                                                  # (B, H2)

    # v1 = gate (broadcast over the 3 vector components) * vec2
    vec2 = vw[:, H:H + H2].reshape(3, b, H2)                           # (3, B, H2)
    v1 = (vec2 * gate[None]).reshape(3 * b, H2)                        # (3B, H2)

    # ----- GatedEquivariantBlock 2 (H//2 -> C, scalar_activation=False) -----
    # (vector output of this block is unused downstream -> vec2_proj and the
    #  gate half of its update_net linear 2 are pruned from the slab)
    vec1b = jnp.dot(v1, W(R_V1B, H2, H2),
                    preferred_element_type=f32).reshape(3, b, H2)      # (3, B, H2)
    vec1bn = jnp.sqrt(jnp.sum(vec1b * vec1b, axis=0))                  # (B, H2)

    h2 = _silu(jnp.dot(jnp.concatenate([x1, vec1bn], axis=1),
                       W(R_U1B, 2 * H2, H2), preferred_element_type=f32)
               + bias(2, H2))                                          # (B, H2)
    x2 = jnp.dot(h2, W(R_U2B, H2, C), preferred_element_type=f32) + bias(3, C)

    # ----- output MLP: Linear -> SiLU -> Linear -> SiLU -> Linear -----
    m = _silu(jnp.dot(x2, W(R_M1, C, C), preferred_element_type=f32) + bias(4, C))
    m = _silu(jnp.dot(m, W(R_M2, C, C), preferred_element_type=f32) + bias(5, C))
    out = jnp.dot(m, W(R_M3, C, OUT_PAD), preferred_element_type=f32) + bias(6, OUT_PAD)

    out_ref[...] = out.astype(out_ref.dtype)


# --------------- one-time, host-side parameter packing (init) ---------------
def pack_params(params):
    """Split / prune / pad / pack the original module parameters into a single
    lane-dense (SLAB_ROWS, 128) f32 slab.  Runs ONCE at init (numpy), outside
    the jitted forward path."""
    (w_v1a, w_v2a, w_u1a, b_u1a, w_u2a, b_u2a,
     w_v1b, w_v2b, w_u1b, b_u1b, w_u2b, b_u2b,
     w_m1, b_m1, w_m2, b_m2, w_m3, b_m3) = [np.asarray(p, np.float32) for p in params]
    del w_v2b  # block-2 vec2_proj output never feeds the scalar path

    slab = np.zeros((SLAB_ROWS, 128), np.float32)
    # fused vec1_proj | vec2_proj of block 1
    slab[R_VA:R_VA + H, :H] = w_v1a
    slab[R_VA:R_VA + H, H:H + H2] = w_v2a
    # block-1 update net (original fused layouts)
    slab[R_U1A:R_U1A + 2 * H, :H] = w_u1a
    slab[R_U2A:R_U2A + H, :H] = w_u2a            # cols [:H2]=scalar, [H2:]=gate
    # block 2
    slab[R_V1B:R_V1B + H2, :H2] = w_v1b
    slab[R_U1B:R_U1B + 2 * H2, :H2] = w_u1b
    slab[R_U2B:R_U2B + H2, :C] = w_u2b[:, :C]    # scalar half only (gate unused)
    # output MLP (final layer lane-padded to OUT_PAD)
    slab[R_M1:R_M1 + C, :C] = w_m1
    slab[R_M2:R_M2 + C, :C] = w_m2
    slab[R_M3:R_M3 + C, :OUT] = w_m3
    # biases, one row each
    slab[R_BIAS + 0, :H] = b_u1a[0]
    slab[R_BIAS + 1, :H] = b_u2a[0]              # [:H2]=scalar, [H2:]=gate
    slab[R_BIAS + 2, :H2] = b_u1b[0]
    slab[R_BIAS + 3, :C] = b_u2b[0, :C]
    slab[R_BIAS + 4, :C] = b_m1[0]
    slab[R_BIAS + 5, :C] = b_m2[0]
    slab[R_BIAS + 6, :OUT] = b_m3[0]
    return jnp.asarray(slab)


# ------------------------------ wrapper --------------------------------------
def lobe_forward(data_barh, slab):
    """data_barh: (B, A, 4, H) float32; slab: packed (SLAB_ROWS, 128) params."""
    b, a, four, h = data_barh.shape
    assert four == 4 and h == H

    # Atom reduction hoisted out of the kernel (fuses into the producer graph).
    summed = jnp.sum(data_barh, axis=1)                                   # (B, 4, H)
    x_sum = summed[:, 0, :]                                               # (B, H)
    v_sum = jnp.transpose(summed[:, 1:, :], (1, 0, 2)).reshape(3 * b, h)  # (3B, H)

    vmem_spec = pl.BlockSpec(memory_space=pltpu.MemorySpace.VMEM)
    out = pl.pallas_call(
        lobe_kernel,
        out_shape=jax.ShapeDtypeStruct((b, OUT_PAD), jnp.float32),
        in_specs=[vmem_spec, vmem_spec, vmem_spec],
        out_specs=vmem_spec,
    )(x_sum, v_sum, slab)
    return out[:, :OUT]


# ------------------------- pure-JAX reference -------------------------------
def lobe_reference(data_barh, params):
    (w_v1a, w_v2a, w_u1a, b_u1a, w_u2a, b_u2a,
     w_v1b, w_v2b, w_u1b, b_u1b, w_u2b, b_u2b,
     w_m1, b_m1, w_m2, b_m2, w_m3, b_m3) = params
    summed = jnp.sum(data_barh, axis=1)
    x, v = summed[:, 0, :], summed[:, 1:, :]
    vec1 = jnp.linalg.norm(jnp.einsum("bvh,hk->bvk", v, w_v1a), axis=1)
    vec2 = jnp.einsum("bvh,hk->bvk", v, w_v2a)
    h = _silu(jnp.concatenate([x, vec1], -1) @ w_u1a + b_u1a)
    o = h @ w_u2a + b_u2a
    x1, v1 = _silu(o[:, :H2]), o[:, None, H2:] * vec2
    vec1b = jnp.linalg.norm(jnp.einsum("bvh,hk->bvk", v1, w_v1b), axis=1)
    h2 = _silu(jnp.concatenate([x1, vec1b], -1) @ w_u1b + b_u1b)
    x2 = (h2 @ w_u2b + b_u2b)[:, :C]
    m = _silu(x2 @ w_m1 + b_m1)
    m = _silu(m @ w_m2 + b_m2)
    return m @ w_m3 + b_m3


# -------------------- synthetic representation model ------------------------
def synthetic_rep_model(z, pos, emb, wx, wv):
    """Deterministic stand-in producing (x_rep, v_rep) like a geom2vec encoder."""
    e = emb[z]                                               # (N, H)
    x_rep = jnp.tanh(e + pos @ wx)                           # (N, H)
    v_rep = pos[:, :, None] * jnp.tanh(e @ wv)[:, None, :]   # (N, 3, H)
    return x_rep, v_rep


# ------------------------------ main ----------------------------------------
if __name__ == "__main__":
    key = jax.random.PRNGKey(0)
    keys = jax.random.split(key, 32)
    ki = iter(keys)

    def w(shape, scale=0.05):
        return (scale * jax.random.normal(next(ki), shape)).astype(jnp.float32)

    # Lobe inputs: atomic numbers and positions.
    atomic_numbers = jax.random.randint(next(ki), (A,), 1, 10)
    pos = jax.random.normal(next(ki), (B, A, 3), dtype=jnp.float32)

    # Synthetic representation model parameters (glue, plain JAX).
    emb = w((10, H))
    wx_rep = w((3, H))
    wv_rep = w((H, H))

    # Lobe parameters (deterministic init), matching the PyTorch module layout.
    params = [
        w((H, H)),                        # block1 vec1_proj (no bias)
        w((H, H2)),                       # block1 vec2_proj (no bias)
        w((2 * H, H)), w((1, H)),         # block1 update_net linear 1
        w((H, 2 * H2)), w((1, 2 * H2)),   # block1 update_net linear 2
        w((H2, H2)),                      # block2 vec1_proj
        w((H2, C)),                       # block2 vec2_proj (unused downstream)
        w((2 * H2, H2)), w((1, H2)),      # block2 update_net linear 1
        w((H2, 2 * C)), w((1, 2 * C)),    # block2 update_net linear 2
        w((C, C)), w((1, C)),             # MLP layer 1
        w((C, C)), w((1, C)),             # MLP layer 2
        w((C, OUT)), w((1, OUT)),         # MLP layer 3 (out_activation=None)
    ]

    # One-time parameter packing (hoisted out of the per-step path).
    slab = pack_params(params)

    # rep_model call (outside the kernel; it is an external module).
    z_batch = jnp.tile(atomic_numbers[None, :], (B, 1)).reshape(-1)
    x_rep, v_rep = synthetic_rep_model(z_batch, pos.reshape(-1, 3),
                                       emb, wx_rep, wv_rep)
    x_rep = x_rep.reshape(B, A, 1, H)
    v_rep = v_rep.reshape(B, A, 3, H)
    data = jnp.concatenate([x_rep, v_rep], axis=-2)          # (B, A, 4, H)

    lobe_forward_jit = jax.jit(lobe_forward)
    out = lobe_forward_jit(data, slab)
    out = jax.block_until_ready(out)

    ref = lobe_reference(data, params)
    np.testing.assert_allclose(np.asarray(out), np.asarray(ref),
                               rtol=1e-4, atol=1e-4)
    assert out.shape == (B, OUT)
    print("KERNEL_OK")
</pallas_src>

<mosaic_0001>
module attributes {stable_mosaic.version = 11 : i64} {
  func.func @lobe_kernel(%arg0: memref<8x64xf32, #tpu.memory_space<vmem>>, %arg1: memref<24x64xf32, #tpu.memory_space<vmem>>, %arg2: memref<584x128xf32, #tpu.memory_space<vmem>>, %arg3: memref<8x128xf32, #tpu.memory_space<vmem>>) attributes {dimension_semantics = [], scalar_prefetch = 0 : i64, scratch_operands = 0 : i64, tpu.core_type = #tpu.core_type<tc>} {
    %c0 = arith.constant 0 : index
    %c0_0 = arith.constant 0 : index
    %0 = vector.load %arg0[%c0, %c0_0] : memref<8x64xf32, #tpu.memory_space<vmem>>, vector<8x64xf32>
    %c0_1 = arith.constant 0 : index
    %c0_2 = arith.constant 0 : index
    %1 = vector.load %arg1[%c0_1, %c0_2] : memref<24x64xf32, #tpu.memory_space<vmem>>, vector<24x64xf32>
    %c0_3 = arith.constant 0 : index
    %c0_4 = arith.constant 0 : index
    %2 = vector.load %arg2[%c0_3, %c0_4] : memref<584x128xf32, #tpu.memory_space<vmem>>, vector<64x96xf32>
    %cst = arith.constant dense<0.000000e+00> : vector<24x96xf32>
    %3 = tpu.matmul %1, %2, %cst {dimension_numbers = #tpu.dot_dimension_numbers<[1], [0], [0], [1], [0, 0, 1, 1], [], []>} : vector<24x64xf32>, vector<64x96xf32>, vector<24x96xf32> -> vector<24x96xf32>
    %4 = vector.extract_strided_slice %3 {offsets = [0, 0], sizes = [24, 64], strides = [1, 1]} : vector<24x96xf32> to vector<24x64xf32>
    %5 = vector.shape_cast %4 : vector<24x64xf32> to vector<3x8x64xf32>
    %6 = arith.mulf %5, %5 : vector<3x8x64xf32>
    %cst_5 = arith.constant dense<0.000000e+00> : vector<8x64xf32>
    %7 = vector.multi_reduction <add>, %6, %cst_5 [0] : vector<3x8x64xf32> to vector<8x64xf32>
    %8 = math.sqrt %7 : vector<8x64xf32>
    %9 = tpu.concatenate %0, %8 in 1 : vector<8x64xf32>, vector<8x64xf32> -> vector<8x128xf32>
    %c64 = arith.constant 64 : index
    %c0_6 = arith.constant 0 : index
    %10 = vector.load %arg2[%c64, %c0_6] : memref<584x128xf32, #tpu.memory_space<vmem>>, vector<128x64xf32>
    %cst_7 = arith.constant dense<0.000000e+00> : vector<8x64xf32>
    %11 = tpu.matmul %9, %10, %cst_7 {dimension_numbers = #tpu.dot_dimension_numbers<[1], [0], [0], [1], [0, 0, 1, 1], [], []>} : vector<8x128xf32>, vector<128x64xf32>, vector<8x64xf32> -> vector<8x64xf32>
    %c576 = arith.constant 576 : index
    %c0_8 = arith.constant 0 : index
    %12 = vector.load %arg2[%c576, %c0_8] : memref<584x128xf32, #tpu.memory_space<vmem>>, vector<1x64xf32>
    %13 = vector.broadcast %12 : vector<1x64xf32> to vector<8x64xf32>
    %14 = arith.addf %11, %13 : vector<8x64xf32>
    %15 = arith.negf %14 : vector<8x64xf32>
    %16 = math.exp %15 : vector<8x64xf32>
    %cst_9 = arith.constant 1.000000e+00 : f32
    %17 = vector.broadcast %cst_9 : f32 to vector<8x64xf32>
    %18 = arith.addf %17, %16 : vector<8x64xf32>
    %19 = arith.divf %17, %18 : vector<8x64xf32>
    %20 = arith.mulf %14, %19 : vector<8x64xf32>
    %c192 = arith.constant 192 : index
    %c0_10 = arith.constant 0 : index
    %21 = vector.load %arg2[%c192, %c0_10] : memref<584x128xf32, #tpu.memory_space<vmem>>, vector<64x64xf32>
    %cst_11 = arith.constant dense<0.000000e+00> : vector<8x64xf32>
    %22 = tpu.matmul %20, %21, %cst_11 {dimension_numbers = #tpu.dot_dimension_numbers<[1], [0], [0], [1], [0, 0, 1, 1], [], []>} : vector<8x64xf32>, vector<64x64xf32>, vector<8x64xf32> -> vector<8x64xf32>
    %c577 = arith.constant 577 : index
    %c0_12 = arith.constant 0 : index
    %23 = vector.load %arg2[%c577, %c0_12] : memref<584x128xf32, #tpu.memory_space<vmem>>, vector<1x64xf32>
    %24 = vector.broadcast %23 : vector<1x64xf32> to vector<8x64xf32>
    %25 = arith.addf %22, %24 : vector<8x64xf32>
    %26 = vector.extract_strided_slice %25 {offsets = [0, 0], sizes = [8, 32], strides = [1, 1]} : vector<8x64xf32> to vector<8x32xf32>
    %27 = arith.negf %26 : vector<8x32xf32>
    %28 = math.exp %27 : vector<8x32xf32>
    %cst_13 = arith.constant 1.000000e+00 : f32
    %29 = vector.broadcast %cst_13 : f32 to vector<8x32xf32>
    %30 = arith.addf %29, %28 : vector<8x32xf32>
    %31 = arith.divf %29, %30 : vector<8x32xf32>
    %32 = arith.mulf %26, %31 : vector<8x32xf32>
    %33 = vector.extract_strided_slice %25 {offsets = [0, 32], sizes = [8, 32], strides = [1, 1]} : vector<8x64xf32> to vector<8x32xf32>
    %34 = vector.extract_strided_slice %3 {offsets = [0, 64], sizes = [24, 32], strides = [1, 1]} : vector<24x96xf32> to vector<24x32xf32>
    %35 = vector.shape_cast %34 : vector<24x32xf32> to vector<3x8x32xf32>
    %36 = vector.shape_cast %33 : vector<8x32xf32> to vector<1x8x32xf32>
    %37 = vector.broadcast %36 : vector<1x8x32xf32> to vector<3x8x32xf32>
    %38 = arith.mulf %35, %37 : vector<3x8x32xf32>
    %39 = vector.shape_cast %38 : vector<3x8x32xf32> to vector<24x32xf32>
    %c256 = arith.constant 256 : index
    %c0_14 = arith.constant 0 : index
    %40 = vector.load %arg2[%c256, %c0_14] : memref<584x128xf32, #tpu.memory_space<vmem>>, vector<32x32xf32>
    %cst_15 = arith.constant dense<0.000000e+00> : vector<24x32xf32>
    %41 = tpu.matmul %39, %40, %cst_15 {dimension_numbers = #tpu.dot_dimension_numbers<[1], [0], [0], [1], [0, 0, 1, 1], [], []>} : vector<24x32xf32>, vector<32x32xf32>, vector<24x32xf32> -> vector<24x32xf32>
    %42 = vector.shape_cast %41 : vector<24x32xf32> to vector<3x8x32xf32>
    %43 = arith.mulf %42, %42 : vector<3x8x32xf32>
    %cst_16 = arith.constant dense<0.000000e+00> : vector<8x32xf32>
    %44 = vector.multi_reduction <add>, %43, %cst_16 [0] : vector<3x8x32xf32> to vector<8x32xf32>
    %45 = math.sqrt %44 : vector<8x32xf32>
    %46 = tpu.concatenate %32, %45 in 1 : vector<8x32xf32>, vector<8x32xf32> -> vector<8x64xf32>
    %c288 = arith.constant 288 : index
    %c0_17 = arith.constant 0 : index
    %47 = vector.load %arg2[%c288, %c0_17] : memref<584x128xf32, #tpu.memory_space<vmem>>, vector<64x32xf32>
    %cst_18 = arith.constant dense<0.000000e+00> : vector<8x32xf32>
    %48 = tpu.matmul %46, %47, %cst_18 {dimension_numbers = #tpu.dot_dimension_numbers<[1], [0], [0], [1], [0, 0, 1, 1], [], []>} : vector<8x64xf32>, vector<64x32xf32>, vector<8x32xf32> -> vector<8x32xf32>
    %c578 = arith.constant 578 : index
    %c0_19 = arith.constant 0 : index
    %49 = vector.load %arg2[%c578, %c0_19] : memref<584x128xf32, #tpu.memory_space<vmem>>, vector<1x32xf32>
    %50 = vector.broadcast %49 : vector<1x32xf32> to vector<8x32xf32>
    %51 = arith.addf %48, %50 : vector<8x32xf32>
    %52 = arith.negf %51 : vector<8x32xf32>
    %53 = math.exp %52 : vector<8x32xf32>
    %cst_20 = arith.constant 1.000000e+00 : f32
    %54 = vector.broadcast %cst_20 : f32 to vector<8x32xf32>
    %55 = arith.addf %54, %53 : vector<8x32xf32>
    %56 = arith.divf %54, %55 : vector<8x32xf32>
    %57 = arith.mulf %51, %56 : vector<8x32xf32>
    %c352 = arith.constant 352 : index
    %c0_21 = arith.constant 0 : index
    %58 = vector.load %arg2[%c352, %c0_21] : memref<584x128xf32, #tpu.memory_space<vmem>>, vector<32x64xf32>
    %cst_22 = arith.constant dense<0.000000e+00> : vector<8x64xf32>
    %59 = tpu.matmul %57, %58, %cst_22 {dimension_numbers = #tpu.dot_dimension_numbers<[1], [0], [0], [1], [0, 0, 1, 1], [], []>} : vector<8x32xf32>, vector<32x64xf32>, vector<8x64xf32> -> vector<8x64xf32>
    %c579 = arith.constant 579 : index
    %c0_23 = arith.constant 0 : index
    %60 = vector.load %arg2[%c579, %c0_23] : memref<584x128xf32, #tpu.memory_space<vmem>>, vector<1x64xf32>
    %61 = vector.broadcast %60 : vector<1x64xf32> to vector<8x64xf32>
    %62 = arith.addf %59, %61 : vector<8x64xf32>
    %c384 = arith.constant 384 : index
    %c0_24 = arith.constant 0 : index
    %63 = vector.load %arg2[%c384, %c0_24] : memref<584x128xf32, #tpu.memory_space<vmem>>, vector<64x64xf32>
    %cst_25 = arith.constant dense<0.000000e+00> : vector<8x64xf32>
    %64 = tpu.matmul %62, %63, %cst_25 {dimension_numbers = #tpu.dot_dimension_numbers<[1], [0], [0], [1], [0, 0, 1, 1], [], []>} : vector<8x64xf32>, vector<64x64xf32>, vector<8x64xf32> -> vector<8x64xf32>
    %c580 = arith.constant 580 : index
    %c0_26 = arith.constant 0 : index
    %65 = vector.load %arg2[%c580, %c0_26] : memref<584x128xf32, #tpu.memory_space<vmem>>, vector<1x64xf32>
    %66 = vector.broadcast %65 : vector<1x64xf32> to vector<8x64xf32>
    %67 = arith.addf %64, %66 : vector<8x64xf32>
    %68 = arith.negf %67 : vector<8x64xf32>
    %69 = math.exp %68 : vector<8x64xf32>
    %cst_27 = arith.constant 1.000000e+00 : f32
    %70 = vector.broadcast %cst_27 : f32 to vector<8x64xf32>
    %71 = arith.addf %70, %69 : vector<8x64xf32>
    %72 = arith.divf %70, %71 : vector<8x64xf32>
    %73 = arith.mulf %67, %72 : vector<8x64xf32>
    %c448 = arith.constant 448 : index
    %c0_28 = arith.constant 0 : index
    %74 = vector.load %arg2[%c448, %c0_28] : memref<584x128xf32, #tpu.memory_space<vmem>>, vector<64x64xf32>
    %cst_29 = arith.constant dense<0.000000e+00> : vector<8x64xf32>
    %75 = tpu.matmul %73, %74, %cst_29 {dimension_numbers = #tpu.dot_dimension_numbers<[1], [0], [0], [1], [0, 0, 1, 1], [], []>} : vector<8x64xf32>, vector<64x64xf32>, vector<8x64xf32> -> vector<8x64xf32>
    %c581 = arith.constant 581 : index
    %c0_30 = arith.constant 0 : index
    %76 = vector.load %arg2[%c581, %c0_30] : memref<584x128xf32, #tpu.memory_space<vmem>>, vector<1x64xf32>
    %77 = vector.broadcast %76 : vector<1x64xf32> to vector<8x64xf32>
    %78 = arith.addf %75, %77 : vector<8x64xf32>
    %79 = arith.negf %78 : vector<8x64xf32>
    %80 = math.exp %79 : vector<8x64xf32>
    %cst_31 = arith.constant 1.000000e+00 : f32
    %81 = vector.broadcast %cst_31 : f32 to vector<8x64xf32>
    %82 = arith.addf %81, %80 : vector<8x64xf32>
    %83 = arith.divf %81, %82 : vector<8x64xf32>
    %84 = arith.mulf %78, %83 : vector<8x64xf32>
    %c512 = arith.constant 512 : index
    %c0_32 = arith.constant 0 : index
    %85 = vector.load %arg2[%c512, %c0_32] : memref<584x128xf32, #tpu.memory_space<vmem>>, vector<64x128xf32>
    %cst_33 = arith.constant dense<0.000000e+00> : vector<8x128xf32>
    %86 = tpu.matmul %84, %85, %cst_33 {dimension_numbers = #tpu.dot_dimension_numbers<[1], [0], [0], [1], [0, 0, 1, 1], [], []>} : vector<8x64xf32>, vector<64x128xf32>, vector<8x128xf32> -> vector<8x128xf32>
    %c582 = arith.constant 582 : index
    %c0_34 = arith.constant 0 : index
    %87 = vector.load %arg2[%c582, %c0_34] : memref<584x128xf32, #tpu.memory_space<vmem>>, vector<1x128xf32>
    %88 = vector.broadcast %87 : vector<1x128xf32> to vector<8x128xf32>
    %89 = arith.addf %86, %88 : vector<8x128xf32>
    %c0_35 = arith.constant 0 : index
    %c0_36 = arith.constant 0 : index
    %90 = vector.load %arg3[%c0_35, %c0_36] : memref<8x128xf32, #tpu.memory_space<vmem>>, vector<8x128xf32>
    tpu.vector_store %arg3[%c0_35, %c0_36], %89 {strides = array<i32>} : memref<8x128xf32, #tpu.memory_space<vmem>>, vector<8x128xf32>,
    return
  }
}

</mosaic_0001>

<llo_original>
// kernel: lobe_forward.1
$region0: #{lobe_forward.1}
  #allocation0 [shape = 'u32[]', space=smem, size = 0x4, offset = 0x4, fixed_abs, tag = 'smem constant byte address 0x4 - core index']
  #allocation1 [shape = 'u32[144,128]{1,0:T(1,128)}', space=vmem, size = 0x12000, scoped, tag = 'internal scratch']
  %s0 = inlined_call_operand.vmem [shape: f32[8,64], index: 0, kind: input, shape index: {}]
  %s1 = inlined_call_operand.vmem [shape: f32[24,64], index: 1, kind: input, shape index: {}]
  %s2 = inlined_call_operand.vmem [shape: f32[584,128], index: 2, kind: input, shape index: {}]
  %s3 = inlined_call_operand.hbm [shape: f32[8,128], index: 3, kind: output, shape index: {}]
  %s4 = sld [smem:[#allocation0]]
  $region22: #{lobe_forward.1} parent=0
    _
  %s6 = ssub.s32 1, %s4
  %s7 = scalar_select 0, %s6, %s4
  $region1: #{lobe_forward.1} parent=0
    #allocation2 [shape = 'u8[4096]{0}', space=vmem, size = 0x1000, scoped, tag = 'output window, operand 0, single buffered']
    #allocation3 [shape = 's32[1]{0}', space=sflag, size = 0x4, scoped, tag = 'scoped memory for lobe_forward.1']
    %8 = vsyncpa [#allocation3], 0
    // Predicated region
    $region2: #{lobe_forward.1} parent=1 // pred_check
      _
    $region3: #{lobe_forward.1} parent=1 // pred_check_branch
      %10 = sbr.rel (0) target = $region5
    $region4: #{lobe_forward.1} parent=1 // pred_region
      _
    $region5: #{lobe_forward.1} parent=1 // pred_fallthru
      _
    // Predicated region
    $region6: #{lobe_forward.1} parent=1 // pred_check
      _
    $region7: #{lobe_forward.1} parent=1 // pred_check_branch
      %12 = sbr.rel (0) target = $region9
    $region8: #{lobe_forward.1} parent=1 // pred_region
      _
    $region9: #{lobe_forward.1} parent=1 // pred_fallthru
      _
    // Predicated region
    $region10: #{lobe_forward.1} parent=1 // pred_check
      _
    $region11: #{lobe_forward.1} parent=1 // pred_check_branch
      %14 = sbr.rel (0) target = $region13
    $region12: #{lobe_forward.1} parent=1 // pred_region
      _
    $region13: #{lobe_forward.1} parent=1 // pred_fallthru
      _
    %v15 = vld [vmem:[%s0] sm:$0xff]
    %v16 = vld [vmem:[%s1] sm:$0xff]
    %v17 = vld [vmem:[%s1 + $0x8] sm:$0xff]
    %v18 = vld [vmem:[%s1 + $0x10] sm:$0xff]
    %v19 = vld [vmem:[%s2] sm:$0xff]
    %v20 = vld [vmem:[%s2 + $0x8] sm:$0xff]
    %v21 = vld [vmem:[%s2 + $0x10] sm:$0xff]
    %v22 = vld [vmem:[%s2 + $0x18] sm:$0xff]
    %v23 = vld [vmem:[%s2 + $0x20] sm:$0xff]
    %v24 = vld [vmem:[%s2 + $0x28] sm:$0xff]
    %v25 = vld [vmem:[%s2 + $0x30] sm:$0xff]
    %v26 = vld [vmem:[%s2 + $0x38] sm:$0xff]
    %vm27 = vcmask 523264
    %v29 = vsel %vm27, %v16, 0
    %v32 = vsel %vm27, %v17, 0
    %v35 = vsel %vm27, %v18, 0
    %37 = vmatprep.subr.mxu0 0.0
    %38 = vmatpush1.msra.mxu0 %v19
    %39 = vmatprep.subr.mxu0 0.0
    %40 = vmatpush1.msra.mxu0 %v20
    %41 = vmatprep.subr.mxu0 0.0
    %42 = vmatpush1.msra.mxu0 %v21
    %43 = vmatprep.subr.mxu0 0.0
    %44 = vmatpush1.msra.mxu0 %v22
    %45 = vmatprep.subr.mxu0 0.0
    %46 = vmatpush1.msra.mxu0 %v23
    %47 = vmatprep.subr.mxu0 0.0
    %48 = vmatpush1.msra.mxu0 %v24
    %49 = vmatprep.subr.mxu0 0.0
    %50 = vmatpush1.msra.mxu0 %v25
    %51 = vmatprep.subr.mxu0 0.0
    %52 = vmatpush1.msra.mxu0 %v26
    %53 = vmatprep.subr.mxu0 0.0
    %54 = vmatpush1.msra.mxu0 0.0
    %55 = vmatprep.subr.mxu0 0.0
    %56 = vmatpush1.msra.mxu0 0.0
    %57 = vmatprep.subr.mxu0 0.0
    %58 = vmatpush1.msra.mxu0 0.0
    %59 = vmatprep.subr.mxu0 0.0
    %60 = vmatpush1.msra.mxu0 0.0
    %61 = vmatprep.subr.mxu0 0.0
    %62 = vmatpush1.msra.mxu0 0.0
    %63 = vmatprep.subr.mxu0 0.0
    %64 = vmatpush1.msra.mxu0 0.0
    %65 = vmatprep.subr.mxu0 0.0
    %66 = vmatpush1.msra.mxu0 0.0
    %67 = vmatprep.subr.mxu0 0.0
    %68 = vmatpush1.msra.mxu0 0.0
    %69 = vmatprep.subr.mxu0 0.0
    %70 = vmatpush1.msra.mxu0 0.0
    %71 = vmatprep.subr.mxu0 0.0
    %72 = vmatpush1.msra.mxu0 0.0
    %73 = vmatprep.subr.mxu0 0.0
    %74 = vmatpush1.msra.mxu0 0.0
    %75 = vmatprep.subr.mxu0 0.0
    %76 = vmatpush1.msra.mxu0 0.0
    %77 = vmatprep.subr.mxu0 0.0
    %78 = vmatpush1.msra.mxu0 0.0
    %79 = vmatprep.subr.mxu0 0.0
    %80 = vmatpush1.msra.mxu0 0.0
    %81 = vmatprep.subr.mxu0 0.0
    %82 = vmatpush1.msra.mxu0 0.0
    %83 = vmatprep.subr.mxu0 0.0
    %84 = vmatpush1.msra.mxu0 0.0
    %85 = vmatprep.subr.mxu0 0.0
    %86 = vmatpush1.msra.mxu0 0.0
    %87 = vmatprep.subr.mxu0 0.0
    %88 = vmatpush1.msra.mxu0 0.0
    %89 = vmatprep.subr.mxu0 0.0
    %90 = vmatpush1.msra.mxu0 0.0
    %91 = vmatprep.subr.mxu0 0.0
    %92 = vmatpush1.msra.mxu0 0.0
    %93 = vmatprep.subr.mxu0 0.0
    %94 = vmatpush1.msra.mxu0 0.0
    %95 = vmatprep.subr.mxu0 0.0
    %96 = vmatpush1.msra.mxu0 0.0
    %97 = vmatprep.subr.mxu0 0.0
    %98 = vmatpush1.msra.mxu0 0.0
    %99 = vmatprep.subr.mxu0 0.0
    %100 = vmatpush1.msra.mxu0 0.0
    %101 = vmatprep.mubr.f32.mxu0 0.0
    %102 = vmatmul.mubr.f32.gmra.mrb[0].mxu0 %v29
    %v103 = vpop.f32.mrb[0].mxu0
    %v104 = vadd.f32 0.0, %v103
    %v105 = vpop.f32.mrb[0].mxu0
    %106 = vmatprep.mubr.f32.mxu0 0.0
    %107 = vmatmul.mubr.f32.gmra.mrb[0].mxu0 %v32
    %v108 = vpop.f32.mrb[0].mxu0
    %v109 = vadd.f32 0.0, %v108
    %v110 = vpop.f32.mrb[0].mxu0
    %111 = vmatprep.mubr.f32.mxu0 0.0
    %112 = vmatmul.mubr.f32.gmra.mrb[0].mxu0 %v35
    %v113 = vpop.f32.mrb[0].mxu0
    %v114 = vadd.f32 0.0, %v113
    %v115 = vpop.f32.mrb[0].mxu0
    %116 = vdwg.mxu0
    %v117 = vmul.f32 %v104, %v104
    %v118 = vmul.f32 %v109, %v109
    %v119 = vmul.f32 %v114, %v114
    %v120 = vsel %vm27, %v117, 0.0
    %v121 = vsel %vm27, %v118, 0.0
    %v122 = vadd.f32 %v120, %v121
    %v123 = vsel %vm27, %v119, 0.0
    %v124 = vadd.f32 %v122, %v123
    %v125 = vrsqrt.pop %v124
    %v126 = vmul.f32 %v124, %v125
    %vm127 = vcmp.eq.f32.partialorder %v124, inf
    %v128 = vsel %vm127, %v124, %v126
    %vm129 = vcmp.eq.f32.partialorder %v124, 0.0
    %v130 = vand.u32 %v124, 2147483648
    %v131 = vsel %vm129, %v130, %v128
    %133 = vrot.lane.b32.xlu0 %v131, 64
    %v134 = vpop.permute.xlu0 %133
    %v136 = vsel %vm27, %v15, %v134
    %v137 = vld [vmem:[%s2 + $0x40] sm:$0xff]
    %v138 = vld [vmem:[%s2 + $0x48] sm:$0xff]
    %v139 = vld [vmem:[%s2 + $0x50] sm:$0xff]
    %v140 = vld [vmem:[%s2 + $0x58] sm:$0xff]
    %v141 = vld [vmem:[%s2 + $0x60] sm:$0xff]
    %v142 = vld [vmem:[%s2 + $0x68] sm:$0xff]
    %v143 = vld [vmem:[%s2 + $0x70] sm:$0xff]
    %v144 = vld [vmem:[%s2 + $0x78] sm:$0xff]
    %v145 = vld [vmem:[%s2 + $0x80] sm:$0xff]
    %v146 = vld [vmem:[%s2 + $0x88] sm:$0xff]
    %v147 = vld [vmem:[%s2 + $0x90] sm:$0xff]
    %v148 = vld [vmem:[%s2 + $0x98] sm:$0xff]
    %v149 = vld [vmem:[%s2 + $0xa0] sm:$0xff]
    %v150 = vld [vmem:[%s2 + $0xa8] sm:$0xff]
    %v151 = vld [vmem:[%s2 + $0xb0] sm:$0xff]
    %v152 = vld [vmem:[%s2 + $0xb8] sm:$0xff]
    %v153 = vld [vmem:[%s2 + $0x240] sm:$0x1]
    %v154 = vlaneseq
    %v155 = vshrl.u32 %v154, 7
    %v156 = vsub.s32 0, %v155
    %v157 = vrot.slane %v153, %v156
    %158 = vmatprep.subr.mxu0 0.0
    %159 = vmatpush1.msra.mxu0 %v137
    %160 = vmatprep.subr.mxu0 0.0
    %161 = vmatpush1.msra.mxu0 %v138
    %162 = vmatprep.subr.mxu0 0.0
    %163 = vmatpush1.msra.mxu0 %v139
    %164 = vmatprep.subr.mxu0 0.0
    %165 = vmatpush1.msra.mxu0 %v140
    %166 = vmatprep.subr.mxu0 0.0
    %167 = vmatpush1.msra.mxu0 %v141
    %168 = vmatprep.subr.mxu0 0.0
    %169 = vmatpush1.msra.mxu0 %v142
    %170 = vmatprep.subr.mxu0 0.0
    %171 = vmatpush1.msra.mxu0 %v143
    %172 = vmatprep.subr.mxu0 0.0
    %173 = vmatpush1.msra.mxu0 %v144
    %174 = vmatprep.subr.mxu0 0.0
    %175 = vmatpush1.msra.mxu0 %v145
    %176 = vmatprep.subr.mxu0 0.0
    %177 = vmatpush1.msra.mxu0 %v146
    %178 = vmatprep.subr.mxu0 0.0
    %179 = vmatpush1.msra.mxu0 %v147
    %180 = vmatprep.subr.mxu0 0.0
    %181 = vmatpush1.msra.mxu0 %v148
    %182 = vmatprep.subr.mxu0 0.0
    %183 = vmatpush1.msra.mxu0 %v149
    %184 = vmatprep.subr.mxu0 0.0
    %185 = vmatpush1.msra.mxu0 %v150
    %186 = vmatprep.subr.mxu0 0.0
    %187 = vmatpush1.msra.mxu0 %v151
    %188 = vmatprep.subr.mxu0 0.0
    %189 = vmatpush1.msra.mxu0 %v152
    %190 = vmatprep.subr.mxu0 0.0
    %191 = vmatpush1.msra.mxu0 0.0
    %192 = vmatprep.subr.mxu0 0.0
    %193 = vmatpush1.msra.mxu0 0.0
    %194 = vmatprep.subr.mxu0 0.0
    %195 = vmatpush1.msra.mxu0 0.0
    %196 = vmatprep.subr.mxu0 0.0
    %197 = vmatpush1.msra.mxu0 0.0
    %198 = vmatprep.subr.mxu0 0.0
    %199 = vmatpush1.msra.mxu0 0.0
    %200 = vmatprep.subr.mxu0 0.0
    %201 = vmatpush1.msra.mxu0 0.0
    %202 = vmatprep.subr.mxu0 0.0
    %203 = vmatpush1.msra.mxu0 0.0
    %204 = vmatprep.subr.mxu0 0.0
    %205 = vmatpush1.msra.mxu0 0.0
    %206 = vmatprep.subr.mxu0 0.0
    %207 = vmatpush1.msra.mxu0 0.0
    %208 = vmatprep.subr.mxu0 0.0
    %209 = vmatpush1.msra.mxu0 0.0
    %210 = vmatprep.subr.mxu0 0.0
    %211 = vmatpush1.msra.mxu0 0.0
    %212 = vmatprep.subr.mxu0 0.0
    %213 = vmatpush1.msra.mxu0 0.0
    %214 = vmatprep.subr.mxu0 0.0
    %215 = vmatpush1.msra.mxu0 0.0
    %216 = vmatprep.subr.mxu0 0.0
    %217 = vmatpush1.msra.mxu0 0.0
    %218 = vmatprep.subr.mxu0 0.0
    %219 = vmatpush1.msra.mxu0 0.0
    %220 = vmatprep.subr.mxu0 0.0
    %221 = vmatpush1.msra.mxu0 0.0
    %222 = vmatprep.mubr.f32.mxu0 0.0
    %223 = vmatmul.mubr.f32.gmra.mrb[0].mxu0 %v136
    %v224 = vpop.f32.mrb[0].mxu0
    %v225 = vadd.f32 %v157, %v224
    %v226 = vpop.f32.mrb[0].mxu0
    %227 = vdwg.mxu0
    %v228 = vxor.u32 %v225, 2147483648
    %v229 = vmul.f32 %v228, 1.442695
    %v230 = vpow.pop %v229
    %v231 = vadd.f32 %v230, 1.0
    %v232 = vrcp.pop %v231
    %v233 = vmul.f32 1.0, %v232
    %v234 = vmul.f32 %v225, %v233
    %v235 = vld [vmem:[%s2 + $0xc0] sm:$0xff]
    %v236 = vld [vmem:[%s2 + $0xc8] sm:$0xff]
    %v237 = vld [vmem:[%s2 + $0xd0] sm:$0xff]
    %v238 = vld [vmem:[%s2 + $0xd8] sm:$0xff]
    %v239 = vld [vmem:[%s2 + $0xe0] sm:$0xff]
    %v240 = vld [vmem:[%s2 + $0xe8] sm:$0xff]
    %v241 = vld [vmem:[%s2 + $0xf0] sm:$0xff]
    %v242 = vld [vmem:[%s2 + $0xf8] sm:$0xff]
    %v243 = vld [vmem:[%s2 + $0x241] sm:$0x1]
    %v244 = vlaneseq
    %v245 = vshrl.u32 %v244, 7
    %v246 = vsub.s32 0, %v245
    %v247 = vrot.slane %v243, %v246
    %v249 = vsel %vm27, %v234, 0
    %251 = vmatprep.subr.mxu0 0.0
    %252 = vmatpush1.msra.mxu0 %v235
    %253 = vmatprep.subr.mxu0 0.0
    %254 = vmatpush1.msra.mxu0 %v236
    %255 = vmatprep.subr.mxu0 0.0
    %256 = vmatpush1.msra.mxu0 %v237
    %257 = vmatprep.subr.mxu0 0.0
    %258 = vmatpush1.msra.mxu0 %v238
    %259 = vmatprep.subr.mxu0 0.0
    %260 = vmatpush1.msra.mxu0 %v239
    %261 = vmatprep.subr.mxu0 0.0
    %262 = vmatpush1.msra.mxu0 %v240
    %263 = vmatprep.subr.mxu0 0.0
    %264 = vmatpush1.msra.mxu0 %v241
    %265 = vmatprep.subr.mxu0 0.0
    %266 = vmatpush1.msra.mxu0 %v242
    %267 = vmatprep.subr.mxu0 0.0
    %268 = vmatpush1.msra.mxu0 0.0
    %269 = vmatprep.subr.mxu0 0.0
    %270 = vmatpush1.msra.mxu0 0.0
    %271 = vmatprep.subr.mxu0 0.0
    %272 = vmatpush1.msra.mxu0 0.0
    %273 = vmatprep.subr.mxu0 0.0
    %274 = vmatpush1.msra.mxu0 0.0
    %275 = vmatprep.subr.mxu0 0.0
    %276 = vmatpush1.msra.mxu0 0.0
    %277 = vmatprep.subr.mxu0 0.0
    %278 = vmatpush1.msra.mxu0 0.0
    %279 = vmatprep.subr.mxu0 0.0
    %280 = vmatpush1.msra.mxu0 0.0
    %281 = vmatprep.subr.mxu0 0.0
    %282 = vmatpush1.msra.mxu0 0.0
    %283 = vmatprep.subr.mxu0 0.0
    %284 = vmatpush1.msra.mxu0 0.0
    %285 = vmatprep.subr.mxu0 0.0
    %286 = vmatpush1.msra.mxu0 0.0
    %287 = vmatprep.subr.mxu0 0.0
    %288 = vmatpush1.msra.mxu0 0.0
    %289 = vmatprep.subr.mxu0 0.0
    %290 = vmatpush1.msra.mxu0 0.0
    %291 = vmatprep.subr.mxu0 0.0
    %292 = vmatpush1.msra.mxu0 0.0
    %293 = vmatprep.subr.mxu0 0.0
    %294 = vmatpush1.msra.mxu0 0.0
    %295 = vmatprep.subr.mxu0 0.0
    %296 = vmatpush1.msra.mxu0 0.0
    %297 = vmatprep.subr.mxu0 0.0
    %298 = vmatpush1.msra.mxu0 0.0
    %299 = vmatprep.subr.mxu0 0.0
    %300 = vmatpush1.msra.mxu0 0.0
    %301 = vmatprep.subr.mxu0 0.0
    %302 = vmatpush1.msra.mxu0 0.0
    %303 = vmatprep.subr.mxu0 0.0
    %304 = vmatpush1.msra.mxu0 0.0
    %305 = vmatprep.subr.mxu0 0.0
    %306 = vmatpush1.msra.mxu0 0.0
    %307 = vmatprep.subr.mxu0 0.0
    %308 = vmatpush1.msra.mxu0 0.0
    %309 = vmatprep.subr.mxu0 0.0
    %310 = vmatpush1.msra.mxu0 0.0
    %311 = vmatprep.subr.mxu0 0.0
    %312 = vmatpush1.msra.mxu0 0.0
    %313 = vmatprep.subr.mxu0 0.0
    %314 = vmatpush1.msra.mxu0 0.0
    %315 = vmatprep.mubr.f32.mxu0 0.0
    %316 = vmatmul.mubr.f32.gmra.mrb[0].mxu0 %v249
    %v317 = vpop.f32.mrb[0].mxu0
    %v318 = vadd.f32 %v247, %v317
    %v319 = vpop.f32.mrb[0].mxu0
    %320 = vdwg.mxu0
    %v321 = vxor.u32 %v318, 2147483648
    %v322 = vmul.f32 %v321, 1.442695
    %v323 = vpow.pop %v322
    %v324 = vadd.f32 %v323, 1.0
    %v325 = vrcp.pop %v324
    %v326 = vmul.f32 1.0, %v325
    %v327 = vmul.f32 %v318, %v326
    %329 = vrot.lane.b32.xlu0 %v318, 32
    %v330 = vpop.permute.xlu0 %329
    %v332 = vmul.f32 %v104, %v330
    %v333 = vmul.f32 %v109, %v330
    %v334 = vmul.f32 %v114, %v330
    %v335 = vld [vmem:[%s2 + $0x100] sm:$0xff]
    %v336 = vld [vmem:[%s2 + $0x108] sm:$0xff]
    %v337 = vld [vmem:[%s2 + $0x110] sm:$0xff]
    %v338 = vld [vmem:[%s2 + $0x118] sm:$0xff]
    %342 = vrot.lane.b32.xlu0 %v332, 64
    %v343 = vpop.permute.xlu0 %342
    %344 = vrot.lane.b32.xlu0 %v333, 64
    %v345 = vpop.permute.xlu0 %344
    %346 = vrot.lane.b32.xlu0 %v334, 64
    %v347 = vpop.permute.xlu0 %346
    %vm348 = vcmask 261120
    %v349 = vsel %vm348, %v343, 0
    %v351 = vsel %vm348, %v345, 0
    %v353 = vsel %vm348, %v347, 0
    %355 = vmatprep.subr.mxu0 0.0
    %356 = vmatpush1.msra.mxu0 %v335
    %357 = vmatprep.subr.mxu0 0.0
    %358 = vmatpush1.msra.mxu0 %v336
    %359 = vmatprep.subr.mxu0 0.0
    %360 = vmatpush1.msra.mxu0 %v337
    %361 = vmatprep.subr.mxu0 0.0
    %362 = vmatpush1.msra.mxu0 %v338
    %363 = vmatprep.subr.mxu0 0.0
    %364 = vmatpush1.msra.mxu0 0.0
    %365 = vmatprep.subr.mxu0 0.0
    %366 = vmatpush1.msra.mxu0 0.0
    %367 = vmatprep.subr.mxu0 0.0
    %368 = vmatpush1.msra.mxu0 0.0
    %369 = vmatprep.subr.mxu0 0.0
    %370 = vmatpush1.msra.mxu0 0.0
    %371 = vmatprep.subr.mxu0 0.0
    %372 = vmatpush1.msra.mxu0 0.0
    %373 = vmatprep.subr.mxu0 0.0
    %374 = vmatpush1.msra.mxu0 0.0
    %375 = vmatprep.subr.mxu0 0.0
    %376 = vmatpush1.msra.mxu0 0.0
    %377 = vmatprep.subr.mxu0 0.0
    %378 = vmatpush1.msra.mxu0 0.0
    %379 = vmatprep.subr.mxu0 0.0
    %380 = vmatpush1.msra.mxu0 0.0
    %381 = vmatprep.subr.mxu0 0.0
    %382 = vmatpush1.msra.mxu0 0.0
    %383 = vmatprep.subr.mxu0 0.0
    %384 = vmatpush1.msra.mxu0 0.0
    %385 = vmatprep.subr.mxu0 0.0
    %386 = vmatpush1.msra.mxu0 0.0
    %387 = vmatprep.subr.mxu0 0.0
    %388 = vmatpush1.msra.mxu0 0.0
    %389 = vmatprep.subr.mxu0 0.0
    %390 = vmatpush1.msra.mxu0 0.0
    %391 = vmatprep.subr.mxu0 0.0
    %392 = vmatpush1.msra.mxu0 0.0
    %393 = vmatprep.subr.mxu0 0.0
    %394 = vmatpush1.msra.mxu0 0.0
    %395 = vmatprep.subr.mxu0 0.0
    %396 = vmatpush1.msra.mxu0 0.0
    %397 = vmatprep.subr.mxu0 0.0
    %398 = vmatpush1.msra.mxu0 0.0
    %399 = vmatprep.subr.mxu0 0.0
    %400 = vmatpush1.msra.mxu0 0.0
    %401 = vmatprep.subr.mxu0 0.0
    %402 = vmatpush1.msra.mxu0 0.0
    %403 = vmatprep.subr.mxu0 0.0
    %404 = vmatpush1.msra.mxu0 0.0
    %405 = vmatprep.subr.mxu0 0.0
    %406 = vmatpush1.msra.mxu0 0.0
    %407 = vmatprep.subr.mxu0 0.0
    %408 = vmatpush1.msra.mxu0 0.0
    %409 = vmatprep.subr.mxu0 0.0
    %410 = vmatpush1.msra.mxu0 0.0
    %411 = vmatprep.subr.mxu0 0.0
    %412 = vmatpush1.msra.mxu0 0.0
    %413 = vmatprep.subr.mxu0 0.0
    %414 = vmatpush1.msra.mxu0 0.0
    %415 = vmatprep.subr.mxu0 0.0
    %416 = vmatpush1.msra.mxu0 0.0
    %417 = vmatprep.subr.mxu0 0.0
    %418 = vmatpush1.msra.mxu0 0.0
    %419 = vmatprep.mubr.f32.mxu0 0.0
    %420 = vmatmul.mubr.f32.gmra.mrb[0].mxu0 %v349
    %v421 = vpop.f32.mrb[0].mxu0
    %v422 = vadd.f32 0.0, %v421
    %v423 = vpop.f32.mrb[0].mxu0
    %424 = vmatprep.mubr.f32.mxu0 0.0
    %425 = vmatmul.mubr.f32.gmra.mrb[0].mxu0 %v351
    %v426 = vpop.f32.mrb[0].mxu0
    %v427 = vadd.f32 0.0, %v426
    %v428 = vpop.f32.mrb[0].mxu0
    %429 = vmatprep.mubr.f32.mxu0 0.0
    %430 = vmatmul.mubr.f32.gmra.mrb[0].mxu0 %v353
    %v431 = vpop.f32.mrb[0].mxu0
    %v432 = vadd.f32 0.0, %v431
    %v433 = vpop.f32.mrb[0].mxu0
    %434 = vdwg.mxu0
    %v435 = vmul.f32 %v422, %v422
    %v436 = vmul.f32 %v427, %v427
    %v437 = vmul.f32 %v432, %v432
    %v438 = vsel %vm348, %v435, 0.0
    %v439 = vsel %vm348, %v436, 0.0
    %v440 = vadd.f32 %v438, %v439
    %v441 = vsel %vm348, %v437, 0.0
    %v442 = vadd.f32 %v440, %v441
    %v443 = vrsqrt.pop %v442
    %v444 = vmul.f32 %v442, %v443
    %vm445 = vcmp.eq.f32.partialorder %v442, inf
    %v446 = vsel %vm445, %v442, %v444
    %vm447 = vcmp.eq.f32.partialorder %v442, 0.0
    %v448 = vand.u32 %v442, 2147483648
    %v449 = vsel %vm447, %v448, %v446
    %451 = vrot.lane.b32.xlu0 %v449, 32
    %v452 = vpop.permute.xlu0 %451
    %v454 = vsel %vm348, %v327, %v452
    %v455 = vld [vmem:[%s2 + $0x120] sm:$0xff]
    %v456 = vld [vmem:[%s2 + $0x128] sm:$0xff]
    %v457 = vld [vmem:[%s2 + $0x130] sm:$0xff]
    %v458 = vld [vmem:[%s2 + $0x138] sm:$0xff]
    %v459 = vld [vmem:[%s2 + $0x140] sm:$0xff]
    %v460 = vld [vmem:[%s2 + $0x148] sm:$0xff]
    %v461 = vld [vmem:[%s2 + $0x150] sm:$0xff]
    %v462 = vld [vmem:[%s2 + $0x158] sm:$0xff]
    %v463 = vld [vmem:[%s2 + $0x242] sm:$0x1]
    %v464 = vlaneseq
    %v465 = vshrl.u32 %v464, 7
    %v466 = vsub.s32 0, %v465
    %v467 = vrot.slane %v463, %v466
    %v469 = vsel %vm27, %v454, 0
    %471 = vmatprep.subr.mxu0 0.0
    %472 = vmatpush1.msra.mxu0 %v455
    %473 = vmatprep.subr.mxu0 0.0
    %474 = vmatpush1.msra.mxu0 %v456
    %475 = vmatprep.subr.mxu0 0.0
    %476 = vmatpush1.msra.mxu0 %v457
    %477 = vmatprep.subr.mxu0 0.0
    %478 = vmatpush1.msra.mxu0 %v458
    %479 = vmatprep.subr.mxu0 0.0
    %480 = vmatpush1.msra.mxu0 %v459
    %481 = vmatprep.subr.mxu0 0.0
    %482 = vmatpush1.msra.mxu0 %v460
    %483 = vmatprep.subr.mxu0 0.0
    %484 = vmatpush1.msra.mxu0 %v461
    %485 = vmatprep.subr.mxu0 0.0
    %486 = vmatpush1.msra.mxu0 %v462
    %487 = vmatprep.subr.mxu0 0.0
    %488 = vmatpush1.msra.mxu0 0.0
    %489 = vmatprep.subr.mxu0 0.0
    %490 = vmatpush1.msra.mxu0 0.0
    %491 = vmatprep.subr.mxu0 0.0
    %492 = vmatpush1.msra.mxu0 0.0
    %493 = vmatprep.subr.mxu0 0.0
    %494 = vmatpush1.msra.mxu0 0.0
    %495 = vmatprep.subr.mxu0 0.0
    %496 = vmatpush1.msra.mxu0 0.0
    %497 = vmatprep.subr.mxu0 0.0
    %498 = vmatpush1.msra.mxu0 0.0
    %499 = vmatprep.subr.mxu0 0.0
    %500 = vmatpush1.msra.mxu0 0.0
    %501 = vmatprep.subr.mxu0 0.0
    %502 = vmatpush1.msra.mxu0 0.0
    %503 = vmatprep.subr.mxu0 0.0
    %504 = vmatpush1.msra.mxu0 0.0
    %505 = vmatprep.subr.mxu0 0.0
    %506 = vmatpush1.msra.mxu0 0.0
    %507 = vmatprep.subr.mxu0 0.0
    %508 = vmatpush1.msra.mxu0 0.0
    %509 = vmatprep.subr.mxu0 0.0
    %510 = vmatpush1.msra.mxu0 0.0
    %511 = vmatprep.subr.mxu0 0.0
    %512 = vmatpush1.msra.mxu0 0.0
    %513 = vmatprep.subr.mxu0 0.0
    %514 = vmatpush1.msra.mxu0 0.0
    %515 = vmatprep.subr.mxu0 0.0
    %516 = vmatpush1.msra.mxu0 0.0
    %517 = vmatprep.subr.mxu0 0.0
    %518 = vmatpush1.msra.mxu0 0.0
    %519 = vmatprep.subr.mxu0 0.0
    %520 = vmatpush1.msra.mxu0 0.0
    %521 = vmatprep.subr.mxu0 0.0
    %522 = vmatpush1.msra.mxu0 0.0
    %523 = vmatprep.subr.mxu0 0.0
    %524 = vmatpush1.msra.mxu0 0.0
    %525 = vmatprep.subr.mxu0 0.0
    %526 = vmatpush1.msra.mxu0 0.0
    %527 = vmatprep.subr.mxu0 0.0
    %528 = vmatpush1.msra.mxu0 0.0
    %529 = vmatprep.subr.mxu0 0.0
    %530 = vmatpush1.msra.mxu0 0.0
    %531 = vmatprep.subr.mxu0 0.0
    %532 = vmatpush1.msra.mxu0 0.0
    %533 = vmatprep.subr.mxu0 0.0
    %534 = vmatpush1.msra.mxu0 0.0
    %535 = vmatprep.mubr.f32.mxu0 0.0
    %536 = vmatmul.mubr.f32.gmra.mrb[0].mxu0 %v469
    %v537 = vpop.f32.mrb[0].mxu0
    %v538 = vadd.f32 %v467, %v537
    %v539 = vpop.f32.mrb[0].mxu0
    %540 = vdwg.mxu0
    %v541 = vxor.u32 %v538, 2147483648
    %v542 = vmul.f32 %v541, 1.442695
    %v543 = vpow.pop %v542
    %v544 = vadd.f32 %v543, 1.0
    %v545 = vrcp.pop %v544
    %v546 = vmul.f32 1.0, %v545
    %v547 = vmul.f32 %v538, %v546
    %v548 = vld [vmem:[%s2 + $0x160] sm:$0xff]
    %v549 = vld [vmem:[%s2 + $0x168] sm:$0xff]
    %v550 = vld [vmem:[%s2 + $0x170] sm:$0xff]
    %v551 = vld [vmem:[%s2 + $0x178] sm:$0xff]
    %v552 = vld [vmem:[%s2 + $0x243] sm:$0x1]
    %v553 = vlaneseq
    %v554 = vshrl.u32 %v553, 7
    %v555 = vsub.s32 0, %v554
    %v556 = vrot.slane %v552, %v555
    %v558 = vsel %vm348, %v547, 0
    %560 = vmatprep.subr.mxu0 0.0
    %561 = vmatpush1.msra.mxu0 %v548
    %562 = vmatprep.subr.mxu0 0.0
    %563 = vmatpush1.msra.mxu0 %v549
    %564 = vmatprep.subr.mxu0 0.0
    %565 = vmatpush1.msra.mxu0 %v550
    %566 = vmatprep.subr.mxu0 0.0
    %567 = vmatpush1.msra.mxu0 %v551
    %568 = vmatprep.subr.mxu0 0.0
    %569 = vmatpush1.msra.mxu0 0.0
    %570 = vmatprep.subr.mxu0 0.0
    %571 = vmatpush1.msra.mxu0 0.0
    %572 = vmatprep.subr.mxu0 0.0
    %573 = vmatpush1.msra.mxu0 0.0
    %574 = vmatprep.subr.mxu0 0.0
    %575 = vmatpush1.msra.mxu0 0.0
    %576 = vmatprep.subr.mxu0 0.0
    %577 = vmatpush1.msra.mxu0 0.0
    %578 = vmatprep.subr.mxu0 0.0
    %579 = vmatpush1.msra.mxu0 0.0
    %580 = vmatprep.subr.mxu0 0.0
    %581 = vmatpush1.msra.mxu0 0.0
    %582 = vmatprep.subr.mxu0 0.0
    %583 = vmatpush1.msra.mxu0 0.0
    %584 = vmatprep.subr.mxu0 0.0
    %585 = vmatpush1.msra.mxu0 0.0
    %586 = vmatprep.subr.mxu0 0.0
    %587 = vmatpush1.msra.mxu0 0.0
    %588 = vmatprep.subr.mxu0 0.0
    %589 = vmatpush1.msra.mxu0 0.0
    %590 = vmatprep.subr.mxu0 0.0
    %591 = vmatpush1.msra.mxu0 0.0
    %592 = vmatprep.subr.mxu0 0.0
    %593 = vmatpush1.msra.mxu0 0.0
    %594 = vmatprep.subr.mxu0 0.0
    %595 = vmatpush1.msra.mxu0 0.0
    %596 = vmatprep.subr.mxu0 0.0
    %597 = vmatpush1.msra.mxu0 0.0
    %598 = vmatprep.subr.mxu0 0.0
    %599 = vmatpush1.msra.mxu0 0.0
    %600 = vmatprep.subr.mxu0 0.0
    %601 = vmatpush1.msra.mxu0 0.0
    %602 = vmatprep.subr.mxu0 0.0
    %603 = vmatpush1.msra.mxu0 0.0
    %604 = vmatprep.subr.mxu0 0.0
    %605 = vmatpush1.msra.mxu0 0.0
    %606 = vmatprep.subr.mxu0 0.0
    %607 = vmatpush1.msra.mxu0 0.0
    %608 = vmatprep.subr.mxu0 0.0
    %609 = vmatpush1.msra.mxu0 0.0
    %610 = vmatprep.subr.mxu0 0.0
    %611 = vmatpush1.msra.mxu0 0.0
    %612 = vmatprep.subr.mxu0 0.0
    %613 = vmatpush1.msra.mxu0 0.0
    %614 = vmatprep.subr.mxu0 0.0
    %615 = vmatpush1.msra.mxu0 0.0
    %616 = vmatprep.subr.mxu0 0.0
    %617 = vmatpush1.msra.mxu0 0.0
    %618 = vmatprep.subr.mxu0 0.0
    %619 = vmatpush1.msra.mxu0 0.0
    %620 = vmatprep.subr.mxu0 0.0
    %621 = vmatpush1.msra.mxu0 0.0
    %622 = vmatprep.subr.mxu0 0.0
    %623 = vmatpush1.msra.mxu0 0.0
    %624 = vmatprep.mubr.f32.mxu0 0.0
    %625 = vmatmul.mubr.f32.gmra.mrb[0].mxu0 %v558
    %v626 = vpop.f32.mrb[0].mxu0
    %v627 = vadd.f32 %v556, %v626
    %v628 = vpop.f32.mrb[0].mxu0
    %629 = vdwg.mxu0
    %v630 = vld [vmem:[%s2 + $0x180] sm:$0xff]
    %v631 = vld [vmem:[%s2 + $0x188] sm:$0xff]
    %v632 = vld [vmem:[%s2 + $0x190] sm:$0xff]
    %v633 = vld [vmem:[%s2 + $0x198] sm:$0xff]
    %v634 = vld [vmem:[%s2 + $0x1a0] sm:$0xff]
    %v635 = vld [vmem:[%s2 + $0x1a8] sm:$0xff]
    %v636 = vld [vmem:[%s2 + $0x1b0] sm:$0xff]
    %v637 = vld [vmem:[%s2 + $0x1b8] sm:$0xff]
    %v638 = vld [vmem:[%s2 + $0x244] sm:$0x1]
    %v639 = vlaneseq
    %v640 = vshrl.u32 %v639, 7
    %v641 = vsub.s32 0, %v640
    %v642 = vrot.slane %v638, %v641
    %v644 = vsel %vm27, %v627, 0
    %646 = vmatprep.subr.mxu0 0.0
    %647 = vmatpush1.msra.mxu0 %v630
    %648 = vmatprep.subr.mxu0 0.0
    %649 = vmatpush1.msra.mxu0 %v631
    %650 = vmatprep.subr.mxu0 0.0
    %651 = vmatpush1.msra.mxu0 %v632
    %652 = vmatprep.subr.mxu0 0.0
    %653 = vmatpush1.msra.mxu0 %v633
    %654 = vmatprep.subr.mxu0 0.0
    %655 = vmatpush1.msra.mxu0 %v634
    %656 = vmatprep.subr.mxu0 0.0
    %657 = vmatpush1.msra.mxu0 %v635
    %658 = vmatprep.subr.mxu0 0.0
    %659 = vmatpush1.msra.mxu0 %v636
    %660 = vmatprep.subr.mxu0 0.0
    %661 = vmatpush1.msra.mxu0 %v637
    %662 = vmatprep.subr.mxu0 0.0
    %663 = vmatpush1.msra.mxu0 0.0
    %664 = vmatprep.subr.mxu0 0.0
    %665 = vmatpush1.msra.mxu0 0.0
    %666 = vmatprep.subr.mxu0 0.0
    %667 = vmatpush1.msra.mxu0 0.0
    %668 = vmatprep.subr.mxu0 0.0
    %669 = vmatpush1.msra.mxu0 0.0
    %670 = vmatprep.subr.mxu0 0.0
    %671 = vmatpush1.msra.mxu0 0.0
    %672 = vmatprep.subr.mxu0 0.0
    %673 = vmatpush1.msra.mxu0 0.0
    %674 = vmatprep.subr.mxu0 0.0
    %675 = vmatpush1.msra.mxu0 0.0
    %676 = vmatprep.subr.mxu0 0.0
    %677 = vmatpush1.msra.mxu0 0.0
    %678 = vmatprep.subr.mxu0 0.0
    %679 = vmatpush1.msra.mxu0 0.0
    %680 = vmatprep.subr.mxu0 0.0
    %681 = vmatpush1.msra.mxu0 0.0
    %682 = vmatprep.subr.mxu0 0.0
    %683 = vmatpush1.msra.mxu0 0.0
    %684 = vmatprep.subr.mxu0 0.0
    %685 = vmatpush1.msra.mxu0 0.0
    %686 = vmatprep.subr.mxu0 0.0
    %687 = vmatpush1.msra.mxu0 0.0
    %688 = vmatprep.subr.mxu0 0.0
    %689 = vmatpush1.msra.mxu0 0.0
    %690 = vmatprep.subr.mxu0 0.0
    %691 = vmatpush1.msra.mxu0 0.0
    %692 = vmatprep.subr.mxu0 0.0
    %693 = vmatpush1.msra.mxu0 0.0
    %694 = vmatprep.subr.mxu0 0.0
    %695 = vmatpush1.msra.mxu0 0.0
    %696 = vmatprep.subr.mxu0 0.0
    %697 = vmatpush1.msra.mxu0 0.0
    %698 = vmatprep.subr.mxu0 0.0
    %699 = vmatpush1.msra.mxu0 0.0
    %700 = vmatprep.subr.mxu0 0.0
    %701 = vmatpush1.msra.mxu0 0.0
    %702 = vmatprep.subr.mxu0 0.0
    %703 = vmatpush1.msra.mxu0 0.0
    %704 = vmatprep.subr.mxu0 0.0
    %705 = vmatpush1.msra.mxu0 0.0
    %706 = vmatprep.subr.mxu0 0.0
    %707 = vmatpush1.msra.mxu0 0.0
    %708 = vmatprep.subr.mxu0 0.0
    %709 = vmatpush1.msra.mxu0 0.0
    %710 = vmatprep.mubr.f32.mxu0 0.0
    %711 = vmatmul.mubr.f32.gmra.mrb[0].mxu0 %v644
    %v712 = vpop.f32.mrb[0].mxu0
    %v713 = vadd.f32 %v642, %v712
    %v714 = vpop.f32.mrb[0].mxu0
    %715 = vdwg.mxu0
    %v716 = vxor.u32 %v713, 2147483648
    %v717 = vmul.f32 %v716, 1.442695
    %v718 = vpow.pop %v717
    %v719 = vadd.f32 %v718, 1.0
    %v720 = vrcp.pop %v719
    %v721 = vmul.f32 1.0, %v720
    %v722 = vmul.f32 %v713, %v721
    %v723 = vld [vmem:[%s2 + $0x1c0] sm:$0xff]
    %v724 = vld [vmem:[%s2 + $0x1c8] sm:$0xff]
    %v725 = vld [vmem:[%s2 + $0x1d0] sm:$0xff]
    %v726 = vld [vmem:[%s2 + $0x1d8] sm:$0xff]
    %v727 = vld [vmem:[%s2 + $0x1e0] sm:$0xff]
    %v728 = vld [vmem:[%s2 + $0x1e8] sm:$0xff]
    %v729 = vld [vmem:[%s2 + $0x1f0] sm:$0xff]
    %v730 = vld [vmem:[%s2 + $0x1f8] sm:$0xff]
    %v731 = vld [vmem:[%s2 + $0x245] sm:$0x1]
    %v732 = vlaneseq
    %v733 = vshrl.u32 %v732, 7
    %v734 = vsub.s32 0, %v733
    %v735 = vrot.slane %v731, %v734
    %v737 = vsel %vm27, %v722, 0
    %739 = vmatprep.subr.mxu0 0.0
    %740 = vmatpush1.msra.mxu0 %v723
    %741 = vmatprep.subr.mxu0 0.0
    %742 = vmatpush1.msra.mxu0 %v724
    %743 = vmatprep.subr.mxu0 0.0
    %744 = vmatpush1.msra.mxu0 %v725
    %745 = vmatprep.subr.mxu0 0.0
    %746 = vmatpush1.msra.mxu0 %v726
    %747 = vmatprep.subr.mxu0 0.0
    %748 = vmatpush1.msra.mxu0 %v727
    %749 = vmatprep.subr.mxu0 0.0
    %750 = vmatpush1.msra.mxu0 %v728
    %751 = vmatprep.subr.mxu0 0.0
    %752 = vmatpush1.msra.mxu0 %v729
    %753 = vmatprep.subr.mxu0 0.0
    %754 = vmatpush1.msra.mxu0 %v730
    %755 = vmatprep.subr.mxu0 0.0
    %756 = vmatpush1.msra.mxu0 0.0
    %757 = vmatprep.subr.mxu0 0.0
    %758 = vmatpush1.msra.mxu0 0.0
    %759 = vmatprep.subr.mxu0 0.0
    %760 = vmatpush1.msra.mxu0 0.0
    %761 = vmatprep.subr.mxu0 0.0
    %762 = vmatpush1.msra.mxu0 0.0
    %763 = vmatprep.subr.mxu0 0.0
    %764 = vmatpush1.msra.mxu0 0.0
    %765 = vmatprep.subr.mxu0 0.0
    %766 = vmatpush1.msra.mxu0 0.0
    %767 = vmatprep.subr.mxu0 0.0
    %768 = vmatpush1.msra.mxu0 0.0
    %769 = vmatprep.subr.mxu0 0.0
    %770 = vmatpush1.msra.mxu0 0.0
    %771 = vmatprep.subr.mxu0 0.0
    %772 = vmatpush1.msra.mxu0 0.0
    %773 = vmatprep.subr.mxu0 0.0
    %774 = vmatpush1.msra.mxu0 0.0
    %775 = vmatprep.subr.mxu0 0.0
    %776 = vmatpush1.msra.mxu0 0.0
    %777 = vmatprep.subr.mxu0 0.0
    %778 = vmatpush1.msra.mxu0 0.0
    %779 = vmatprep.subr.mxu0 0.0
    %780 = vmatpush1.msra.mxu0 0.0
    %781 = vmatprep.subr.mxu0 0.0
    %782 = vmatpush1.msra.mxu0 0.0
    %783 = vmatprep.subr.mxu0 0.0
    %784 = vmatpush1.msra.mxu0 0.0
    %785 = vmatprep.subr.mxu0 0.0
    %786 = vmatpush1.msra.mxu0 0.0
    %787 = vmatprep.subr.mxu0 0.0
    %788 = vmatpush1.msra.mxu0 0.0
    %789 = vmatprep.subr.mxu0 0.0
    %790 = vmatpush1.msra.mxu0 0.0
    %791 = vmatprep.subr.mxu0 0.0
    %792 = vmatpush1.msra.mxu0 0.0
    %793 = vmatprep.subr.mxu0 0.0
    %794 = vmatpush1.msra.mxu0 0.0
    %795 = vmatprep.subr.mxu0 0.0
    %796 = vmatpush1.msra.mxu0 0.0
    %797 = vmatprep.subr.mxu0 0.0
    %798 = vmatpush1.msra.mxu0 0.0
    %799 = vmatprep.subr.mxu0 0.0
    %800 = vmatpush1.msra.mxu0 0.0
    %801 = vmatprep.subr.mxu0 0.0
    %802 = vmatpush1.msra.mxu0 0.0
    %803 = vmatprep.mubr.f32.mxu0 0.0
    %804 = vmatmul.mubr.f32.gmra.mrb[0].mxu0 %v737
    %v805 = vpop.f32.mrb[0].mxu0
    %v806 = vadd.f32 %v735, %v805
    %v807 = vpop.f32.mrb[0].mxu0
    %808 = vdwg.mxu0
    %v809 = vxor.u32 %v806, 2147483648
    %v810 = vmul.f32 %v809, 1.442695
    %v811 = vpow.pop %v810
    %v812 = vadd.f32 %v811, 1.0
    %v813 = vrcp.pop %v812
    %v814 = vmul.f32 1.0, %v813
    %v815 = vmul.f32 %v806, %v814
    %v816 = vld [vmem:[%s2 + $0x200] sm:$0xff]
    %v817 = vld [vmem:[%s2 + $0x208] sm:$0xff]
    %v818 = vld [vmem:[%s2 + $0x210] sm:$0xff]
    %v819 = vld [vmem:[%s2 + $0x218] sm:$0xff]
    %v820 = vld [vmem:[%s2 + $0x220] sm:$0xff]
    %v821 = vld [vmem:[%s2 + $0x228] sm:$0xff]
    %v822 = vld [vmem:[%s2 + $0x230] sm:$0xff]
    %v823 = vld [vmem:[%s2 + $0x238] sm:$0xff]
    %v824 = vld [vmem:[%s2 + $0x246] sm:$0x1]
    %v825 = vlaneseq
    %v826 = vshrl.u32 %v825, 7
    %v827 = vsub.s32 0, %v826
    %v828 = vrot.slane %v824, %v827
    %v830 = vsel %vm27, %v815, 0
    %832 = vmatprep.subr.mxu0 0.0
    %833 = vmatpush1.msra.mxu0 %v816
    %834 = vmatprep.subr.mxu0 0.0
    %835 = vmatpush1.msra.mxu0 %v817
    %836 = vmatprep.subr.mxu0 0.0
    %837 = vmatpush1.msra.mxu0 %v818
    %838 = vmatprep.subr.mxu0 0.0
    %839 = vmatpush1.msra.mxu0 %v819
    %840 = vmatprep.subr.mxu0 0.0
    %841 = vmatpush1.msra.mxu0 %v820
    %842 = vmatprep.subr.mxu0 0.0
    %843 = vmatpush1.msra.mxu0 %v821
    %844 = vmatprep.subr.mxu0 0.0
    %845 = vmatpush1.msra.mxu0 %v822
    %846 = vmatprep.subr.mxu0 0.0
    %847 = vmatpush1.msra.mxu0 %v823
    %848 = vmatprep.subr.mxu0 0.0
    %849 = vmatpush1.msra.mxu0 0.0
    %850 = vmatprep.subr.mxu0 0.0
    %851 = vmatpush1.msra.mxu0 0.0
    %852 = vmatprep.subr.mxu0 0.0
    %853 = vmatpush1.msra.mxu0 0.0
    %854 = vmatprep.subr.mxu0 0.0
    %855 = vmatpush1.msra.mxu0 0.0
    %856 = vmatprep.subr.mxu0 0.0
    %857 = vmatpush1.msra.mxu0 0.0
    %858 = vmatprep.subr.mxu0 0.0
    %859 = vmatpush1.msra.mxu0 0.0
    %860 = vmatprep.subr.mxu0 0.0
    %861 = vmatpush1.msra.mxu0 0.0
    %862 = vmatprep.subr.mxu0 0.0
    %863 = vmatpush1.msra.mxu0 0.0
    %864 = vmatprep.subr.mxu0 0.0
    %865 = vmatpush1.msra.mxu0 0.0
    %866 = vmatprep.subr.mxu0 0.0
    %867 = vmatpush1.msra.mxu0 0.0
    %868 = vmatprep.subr.mxu0 0.0
    %869 = vmatpush1.msra.mxu0 0.0
    %870 = vmatprep.subr.mxu0 0.0
    %871 = vmatpush1.msra.mxu0 0.0
    %872 = vmatprep.subr.mxu0 0.0
    %873 = vmatpush1.msra.mxu0 0.0
    %874 = vmatprep.subr.mxu0 0.0
    %875 = vmatpush1.msra.mxu0 0.0
    %876 = vmatprep.subr.mxu0 0.0
    %877 = vmatpush1.msra.mxu0 0.0
    %878 = vmatprep.subr.mxu0 0.0
    %879 = vmatpush1.msra.mxu0 0.0
    %880 = vmatprep.subr.mxu0 0.0
    %881 = vmatpush1.msra.mxu0 0.0
    %882 = vmatprep.subr.mxu0 0.0
    %883 = vmatpush1.msra.mxu0 0.0
    %884 = vmatprep.subr.mxu0 0.0
    %885 = vmatpush1.msra.mxu0 0.0
    %886 = vmatprep.subr.mxu0 0.0
    %887 = vmatpush1.msra.mxu0 0.0
    %888 = vmatprep.subr.mxu0 0.0
    %889 = vmatpush1.msra.mxu0 0.0
    %890 = vmatprep.subr.mxu0 0.0
    %891 = vmatpush1.msra.mxu0 0.0
    %892 = vmatprep.subr.mxu0 0.0
    %893 = vmatpush1.msra.mxu0 0.0
    %894 = vmatprep.subr.mxu0 0.0
    %895 = vmatpush1.msra.mxu0 0.0
    %896 = vmatprep.mubr.f32.mxu0 0.0
    %897 = vmatmul.mubr.f32.gmra.mrb[0].mxu0 %v830
    %v898 = vpop.f32.mrb[0].mxu0
    %v899 = vadd.f32 %v828, %v898
    %v900 = vpop.f32.mrb[0].mxu0
    %901 = vdwg.mxu0
    %902 = vst [vmem:[#allocation2] sm:$0xff] %v899
    // Predicated region
    $region14: #{lobe_forward.1} parent=1 // pred_check
      _
    $region15: #{lobe_forward.1} parent=1 // pred_check_branch
      %904 = sbr.rel (0) target = $region17
    $region16: #{lobe_forward.1} parent=1 // pred_region
      %s906 = ssub.s32 128, 128
      %907 = vsyncadd [#allocation3], %s906
      %s909 = sshll.u32 [#allocation2], 4
      %s910 = int_to_ptr.vmem [resolvable:$true] %s909
      %912 = dma.vmem_to_hbm [thread:$0]  %s910, 128, %s3, [#allocation3]
    $region17: #{lobe_forward.1} parent=1 // pred_fallthru
      _
    // Predicated region
    $region18: #{lobe_forward.1} parent=1 // pred_check
      _
    $region19: #{lobe_forward.1} parent=1 // pred_check_branch
      %914 = sbr.rel (0) target = $region21
    $region20: #{lobe_forward.1} parent=1 // pred_region
      %915 = dma.done [#allocation3], 128
    $region21: #{lobe_forward.1} parent=1 // pred_fallthru
      _
    %916 = vsyncpa [#allocation3], 1

</llo_original>
